<compile_context>
chip_gen: v7x
topology: tpu7x:2x2x1
jax: 0.10.0
libtpu: 0.0.40
codegen_flags: <defaults>
</compile_context>

<pallas_src>
import functools

import jax
import jax.numpy as jnp
from jax.experimental import pallas as pl
from jax.experimental.pallas import tpu as pltpu

_ELEMENTWISE = ("relu", "tanh", "sigmoid", "softplus")
_SOFTMAX_FAMILY = ("softmax", "softmin", "log_softmax")
_SUPPORTED = _ELEMENTWISE + _SOFTMAX_FAMILY

_VMEM_LIMIT_BYTES = 32 * 1024 * 1024   # safe on v5e/v6e (128 MiB) and v7x (64 MiB)
_TILE_TARGET_BYTES = 2 * 1024 * 1024   # ~2 MiB of data per tile (per buffer)
_MAX_LANE_COLS = 8192                  # lane-dense slab width for elementwise ops


def _sublane_multiple(dtype):
    """Packed-sublane row multiple: 8 for f32, 16 for bf16, 32 for int8/fp8."""
    itemsize = jnp.dtype(dtype).itemsize
    return max(8, 32 // itemsize)


def _choose_cols(n_elems):
    """Lane-dense column width: a large multiple of 128 bounded by problem size."""
    cols = 128
    while cols * 2 <= _MAX_LANE_COLS and cols * 2 <= max(128, n_elems):
        cols *= 2
    return cols


def _row_block(rows, row_bytes, sub):
    """Largest row block that (a) keeps one tile ~_TILE_TARGET_BYTES and
    (b) is a multiple of the sublane packing, or equals the full row extent."""
    tb = max(sub, (_TILE_TARGET_BYTES // max(row_bytes, 1)) // sub * sub)
    return min(tb, rows)  # either a multiple of `sub`, or == rows (full dim)


# ---------------------------------------------------------------------------
# Kernels
# ---------------------------------------------------------------------------

def _elementwise_kernel(x_ref, o_ref, *, nonlinear):
    x = x_ref[...]
    if nonlinear == "relu":
        y = jnp.maximum(x, 0.0)
    elif nonlinear == "tanh":
        y = jnp.tanh(x)
    elif nonlinear == "sigmoid":
        y = 1.0 / (1.0 + jnp.exp(-x))
    elif nonlinear == "softplus":
        # Match F.softplus(beta=1, threshold=20): linear above threshold.
        xf = x.astype(jnp.float32)
        y = jnp.where(xf > 20.0, xf,
                      jnp.log1p(jnp.exp(jnp.minimum(xf, 20.0))))
    else:
        raise ValueError(f'Unknown elementwise nonlinear type "{nonlinear}"')
    o_ref[...] = y.astype(o_ref.dtype)


def _softmax_kernel(x_ref, o_ref, *, nonlinear):
    # Reductions in f32 for stability; output cast back to input dtype.
    x = x_ref[...].astype(jnp.float32)
    z = -x if nonlinear == "softmin" else x
    m = jnp.max(z, axis=-1, keepdims=True)
    e = jnp.exp(z - m)
    s = jnp.sum(e, axis=-1, keepdims=True)
    if nonlinear == "log_softmax":
        y = (z - m) - jnp.log(s)
    else:
        y = e * pl.reciprocal(s, approx=True)   # EUP vrcp, co-issues for free
    o_ref[...] = y.astype(o_ref.dtype)


# ---------------------------------------------------------------------------
# Wrappers
# ---------------------------------------------------------------------------

def _compiler_params():
    return pltpu.CompilerParams(
        dimension_semantics=("parallel",),
        vmem_limit_bytes=_VMEM_LIMIT_BYTES,
    )


def _apply_elementwise(x, nonlinear):
    orig_shape = x.shape
    n = x.size
    sub = _sublane_multiple(x.dtype)
    itemsize = jnp.dtype(x.dtype).itemsize

    # Flatten to a lane-dense 2-D slab (last dim a large multiple of 128).
    cols = _choose_cols(n)
    rows = pl.cdiv(n, cols)
    pad = rows * cols - n
    flat = x.reshape(-1)
    if pad:
        flat = jnp.pad(flat, (0, pad))
    x2 = flat.reshape(rows, cols)

    tb = _row_block(rows, cols * itemsize, sub)
    grid = (pl.cdiv(rows, tb),)

    kernel = functools.partial(_elementwise_kernel, nonlinear=nonlinear)
    out2 = pl.pallas_call(
        kernel,
        out_shape=jax.ShapeDtypeStruct((rows, cols), x.dtype),
        grid_spec=pl.GridSpec(
            grid=grid,
            in_specs=[pl.BlockSpec((tb, cols), lambda i: (i, 0))],
            out_specs=pl.BlockSpec((tb, cols), lambda i: (i, 0)),
        ),
        compiler_params=_compiler_params(),
    )(x2)

    out = out2.reshape(-1)
    if pad:
        out = out[:n]
    return out.reshape(orig_shape)


def _apply_softmax_family(x, nonlinear):
    if x.ndim != 2:
        raise ValueError("softmax-family nonlinearity expects a 2-D (batch, "
                         "features) input, matching the Dense activation path")
    B, F = x.shape
    sub = _sublane_multiple(x.dtype)
    # Budget against f32 compute width (kernel upcasts for the reduction).
    tb = _row_block(B, F * 4, sub)
    grid = (pl.cdiv(B, tb),)

    kernel = functools.partial(_softmax_kernel, nonlinear=nonlinear)
    return pl.pallas_call(
        kernel,
        out_shape=jax.ShapeDtypeStruct((B, F), x.dtype),
        grid_spec=pl.GridSpec(
            grid=grid,
            in_specs=[pl.BlockSpec((tb, F), lambda i: (i, 0))],
            out_specs=pl.BlockSpec((tb, F), lambda i: (i, 0)),
        ),
        compiler_params=_compiler_params(),
    )(x)


def nonlinearity(x, nonlinear="relu"):
    """Forward pass of reinforch Nonlinearity as a Pallas TPU kernel."""
    if nonlinear not in _SUPPORTED:
        raise ValueError(f'Unknown nonlinear type "{nonlinear}"')
    if nonlinear in _ELEMENTWISE:
        return _apply_elementwise(x, nonlinear)
    return _apply_softmax_family(x, nonlinear)


if __name__ == "__main__":
    key = jax.random.PRNGKey(0)
    k1, k2 = jax.random.split(key)

    # Small shapes consistent with a Dense hidden activation: batch=8, hidden=128.
    B, F = 8, 128
    x = jax.random.normal(k1, (B, F), dtype=jnp.float32) * 3.0
    # Odd/small shape to exercise the flatten + lane-dense padding path.
    x_odd = jax.random.normal(k2, (5, 37), dtype=jnp.float32) * 3.0

    # Default module config: nonlinear='relu'
    y_relu = jax.block_until_ready(nonlinearity(x, "relu"))
    assert y_relu.shape == (B, F)
    assert jnp.allclose(y_relu, jnp.maximum(x, 0.0), atol=1e-6), "relu mismatch"

    # Elementwise on a non-128-aligned shape (padding path).
    y_tanh = jax.block_until_ready(nonlinearity(x_odd, "tanh"))
    assert jnp.allclose(y_tanh, jnp.tanh(x_odd), atol=1e-4), "tanh mismatch"

    y_sig = jax.block_until_ready(nonlinearity(x, "sigmoid"))
    assert jnp.allclose(y_sig, jax.nn.sigmoid(x), atol=1e-5), "sigmoid mismatch"

    # Softmax family reduces over the last (feature) axis.
    y_sm = jax.block_until_ready(nonlinearity(x, "softmax"))
    assert jnp.allclose(y_sm, jax.nn.softmax(x, axis=-1), atol=5e-3), \
        "softmax mismatch"  # approx reciprocal -> looser tolerance

    y_lsm = jax.block_until_ready(nonlinearity(x, "log_softmax"))
    assert jnp.allclose(y_lsm, jax.nn.log_softmax(x, axis=-1), atol=1e-5), \
        "log_softmax mismatch"

    print("KERNEL_OK")
</pallas_src>

<mosaic_0001>
module attributes {stable_mosaic.version = 11 : i64} {
  func.func @_elementwise_kernel(%arg0: i32, %arg1: memref<1x1024xf32, #tpu.memory_space<vmem>>, %arg2: memref<1x1024xf32, #tpu.memory_space<vmem>>) attributes {dimension_semantics = [#tpu.dimension_semantics<parallel>], iteration_bounds = array<i64: 1>, scalar_prefetch = 0 : i64, scratch_operands = 0 : i64, tpu.core_type = #tpu.core_type<tc>, window_params = [{transform_indices = @transform_0, window_bounds = array<i64: 1, 1024>}, {transform_indices = @transform_1, window_bounds = array<i64: 1, 1024>}]} {
    %c0 = arith.constant 0 : index
    %c0_0 = arith.constant 0 : index
    %0 = vector.load %arg1[%c0, %c0_0] : memref<1x1024xf32, #tpu.memory_space<vmem>>, vector<1x1024xf32>
    %cst = arith.constant 0.000000e+00 : f32
    %1 = vector.broadcast %cst : f32 to vector<1x1024xf32>
    %2 = arith.maximumf %0, %1 : vector<1x1024xf32>
    %c0_1 = arith.constant 0 : index
    %c0_2 = arith.constant 0 : index
    %3 = vector.load %arg2[%c0_1, %c0_2] : memref<1x1024xf32, #tpu.memory_space<vmem>>, vector<1x1024xf32>
    tpu.vector_store %arg2[%c0_1, %c0_2], %2 {strides = array<i32>} : memref<1x1024xf32, #tpu.memory_space<vmem>>, vector<1x1024xf32>,
    return
  }
  func.func @transform_0(%arg0: i32) -> (i32, i32) {
    %c0_i32 = arith.constant 0 : i32
    %c0_i32_0 = arith.constant 0 : i32
    return %arg0, %c0_i32 : i32, i32
  }
  func.func @transform_1(%arg0: i32) -> (i32, i32) {
    %c0_i32 = arith.constant 0 : i32
    %c0_i32_0 = arith.constant 0 : i32
    return %arg0, %c0_i32 : i32, i32
  }
}

</mosaic_0001>

<llo_original>
// kernel: tpu_custom_call.1
$region0: #{tpu_custom_call.1}
  #allocation0 [shape = 'u32[]', space=smem, size = 0x4, offset = 0x4, fixed_abs, tag = 'smem constant byte address 0x4 - core index']
  #allocation1 [shape = 'u32[144,128]{1,0:T(1,128)}', space=vmem, size = 0x12000, scoped, tag = 'internal scratch']
  %s0 = inlined_call_operand.hbm [shape: f32[1,1024], index: 0, kind: input, shape index: {}]
  %s1 = inlined_call_operand.hbm [shape: f32[1,1024], index: 1, kind: output, shape index: {}]
  %s2 = sld [smem:[#allocation0]]
  $region18: #{tpu_custom_call.1} parent=0
    _
  %s4 = ssub.s32 1, %s2
  %s5 = scalar_select 0, %s4, %s2
  $region1: #{tpu_custom_call.1} parent=0
    #allocation2 [shape = 'u8[4096]{0}', space=vmem, size = 0x1000, scoped, tag = 'input window, operand 0, single buffered']
    #allocation3 [shape = 's32[1]{0}', space=sflag, size = 0x4, scoped, tag = 'scoped memory for tpu_custom_call.1']
    #allocation4 [shape = 's32[1]{0}', space=sflag, size = 0x4, scoped, tag = 'scoped memory for tpu_custom_call.1']
    #allocation5 [shape = 'u8[4096]{0}', space=vmem, size = 0x1000, scoped, tag = 'output window, operand 0, single buffered']
    %6 = vsyncpa [#allocation3], 0
    %7 = vsyncpa [#allocation4], 0
    // Predicated region
    $region2: #{tpu_custom_call.1} parent=1 // pred_check
      _
    $region3: #{tpu_custom_call.1} parent=1 // pred_check_branch
      %9 = sbr.rel (0) target = $region5
    $region4: #{tpu_custom_call.1} parent=1 // pred_region
      %s11 = ssub.s32 128, 128
      %12 = vsyncadd [#allocation3], %s11
      %s14 = sshll.u32 [#allocation2], 4
      %s15 = int_to_ptr.vmem [resolvable:$true] %s14
      %17 = dma.hbm_to_vmem [thread:$0]  %s0, 128, %s15, [#allocation3]
    $region5: #{tpu_custom_call.1} parent=1 // pred_fallthru
      _
    // Predicated region
    $region6: #{tpu_custom_call.1} parent=1 // pred_check
      _
    $region7: #{tpu_custom_call.1} parent=1 // pred_check_branch
      %19 = sbr.rel (0) target = $region9
    $region8: #{tpu_custom_call.1} parent=1 // pred_region
      %20 = dma.done [#allocation3], 128
    $region9: #{tpu_custom_call.1} parent=1 // pred_fallthru
      _
    %v21 = vld [vmem:[#allocation2] sm:$0xff]
    %v22 = vmax.f32 %v21, 0.0
    %23 = vst [vmem:[#allocation5] sm:$0xff] %v22
    // Predicated region
    $region10: #{tpu_custom_call.1} parent=1 // pred_check
      _
    $region11: #{tpu_custom_call.1} parent=1 // pred_check_branch
      %25 = sbr.rel (0) target = $region13
    $region12: #{tpu_custom_call.1} parent=1 // pred_region
      %s27 = ssub.s32 128, 128
      %28 = vsyncadd [#allocation4], %s27
      %s30 = sshll.u32 [#allocation5], 4
      %s31 = int_to_ptr.vmem [resolvable:$true] %s30
      %33 = dma.vmem_to_hbm [thread:$0]  %s31, 128, %s1, [#allocation4]
    $region13: #{tpu_custom_call.1} parent=1 // pred_fallthru
      _
    // Predicated region
    $region14: #{tpu_custom_call.1} parent=1 // pred_check
      _
    $region15: #{tpu_custom_call.1} parent=1 // pred_check_branch
      %35 = sbr.rel (0) target = $region17
    $region16: #{tpu_custom_call.1} parent=1 // pred_region
      %36 = dma.done [#allocation4], 128
    $region17: #{tpu_custom_call.1} parent=1 // pred_fallthru
      _
    %37 = vsyncpa [#allocation3], 1
    %38 = vsyncpa [#allocation4], 1

</llo_original>
